<compile_context>
chip_gen: v5e
topology: v5e:2x2
jax: 0.10.0
libtpu: 0.0.40
codegen_flags: <defaults>
</compile_context>

<pallas_src>
import jax
import jax.numpy as jnp
from jax.experimental import pallas as pl
from jax.experimental.pallas import tpu as pltpu

LEAKY_SLOPE = 0.01  # nn.LeakyReLU() default (attn_act='leakyrelu', no kwargs)


def _gat_fused_kernel(dsth_ref, wdst_ref, adst_ref, es_ref, zaug_ref, rep_ref,
                      out_ref):
    """One grid step == one tile of destination rows, all heads fused."""
    HD = wdst_ref.shape[1]          # num_heads * D
    H = rep_ref.shape[0]            # num_heads

    # Dst projection for all heads: one lane-dense MXU dot (f32 accumulate).
    zd = jnp.dot(dsth_ref[...], wdst_ref[...],
                 preferred_element_type=jnp.float32)               # (bd, HD)

    # Dst-side attention logits expanded to the head-major flat edge layout:
    #   ed[d, h*Ns + s] = z_dst_h[d] . a_dst_h   (block-structured adst matrix)
    ed = jnp.dot(zd.astype(adst_ref.dtype), adst_ref[...],
                 preferred_element_type=jnp.float32)               # (bd, H*Ns)

    # Edge logits + LeakyReLU + softmax numerators for ALL heads in one f32
    # tensor (one broadcast add, one select, one max, one exp).
    e = ed + es_ref[...]                                           # + src logits
    e = jnp.where(e > 0, e, LEAKY_SLOPE * e)                       # LeakyReLU
    # Per-row max over all heads: softmax is shift-invariant, so this is exact
    # while avoiding per-head lane-segment reductions.
    m = jnp.max(e, axis=-1, keepdims=True)
    p = jnp.exp(e - m)                                             # (bd, H*Ns)

    # ONE lane-dense aggregation dot: block-diagonal z_src gives each head's
    # attended sum in 'cat' column layout, and the appended per-head indicator
    # columns give the softmax denominators in the same MXU pass.
    agg = jnp.dot(p.astype(zaug_ref.dtype), zaug_ref[...],
                  preferred_element_type=jnp.float32)              # (bd, NW)

    denom = agg[:, HD:HD + H]                                      # (bd, H)
    r = pl.reciprocal(denom, approx=True)                          # EUP vrcp
    r = r * (2.0 - denom * r)                                      # Newton -> f32
    # Expand each head's reciprocal across its D output columns (zeros on the
    # denominator / pad columns, so those are stored as zeros).
    r_exp = jnp.dot(r, rep_ref[...], preferred_element_type=jnp.float32)
    out_ref[...] = (agg * r_exp).astype(out_ref.dtype)             # full-width vst


def multihead_gat(srch, dsth, w_src, w_dst, attn_w, *, block_dst=None,
                  compute_dtype=jnp.bfloat16):
    """Fully-connected bipartite multi-head GAT, merge_type='cat'.

    srch:   (N_src, src_dim)  source-node features
    dsth:   (N_dst, dst_dim)  destination-node features
    w_src:  (H, src_dim, D)   per-head src_fc weights (pre-transposed: x @ W)
    w_dst:  (H, dst_dim, D)   per-head dst_fc weights (pre-transposed)
    attn_w: (H, 2*D)          per-head attn_fc weight (nn.Linear(2D, 1, bias=False))
    Returns (N_dst, H*D) float32.
    """
    H, Fs, D = w_src.shape
    Fd = w_dst.shape[1]
    Ns = srch.shape[0]
    Nd = dsth.shape[0]
    HD = H * D
    HNs = H * Ns
    NW = ((HD + H + 127) // 128) * 128          # lane-dense (>=128) output width

    f32 = jnp.float32
    eyeH = jnp.eye(H, dtype=f32)

    # ---- One-off wrapper precompute (tiny XLA; src side is grid-invariant) ----
    # Heads concatenated along output columns -> single lane-dense projections.
    wsrc_all = jnp.transpose(w_src, (1, 0, 2)).reshape(Fs, HD).astype(f32)
    wdst_all = jnp.transpose(w_dst, (1, 0, 2)).reshape(Fd, HD)
    # Src projection computed ONCE here (not per dst tile inside the kernel).
    zs = jnp.dot(srch.astype(f32), wsrc_all)                        # (Ns, HD)
    zs3 = zs.reshape(Ns, H, D)
    a_src = attn_w[:, :D].astype(f32)                               # (H, D)
    a_dst = attn_w[:, D:].astype(f32)                               # (H, D)
    # Src-side attention logits, flattened head-major: es_flat[0, h*Ns + s].
    es_flat = jnp.einsum('shd,hd->hs', zs3, a_src).reshape(1, HNs).astype(f32)
    # Dst-side attention expansion matrix (HD, H*Ns): block h applies a_dst[h].
    adst_exp = jnp.broadcast_to(
        a_dst[:, :, None, None] * eyeH[:, None, :, None],
        (H, D, H, Ns)).reshape(HD, HNs)
    # Augmented aggregation matrix (H*Ns, NW): block-diagonal z_src ('cat'
    # output layout) + per-head indicator columns (softmax denominators) + pad.
    zblk = (eyeH[:, None, :, None] *
            jnp.transpose(zs3, (1, 0, 2))[:, :, None, :]).reshape(HNs, HD)
    ones_cols = jnp.repeat(eyeH, Ns, axis=0)                        # (H*Ns, H)
    z_aug = jnp.concatenate(
        [zblk, ones_cols, jnp.zeros((HNs, NW - HD - H), f32)], axis=1)
    # Per-head reciprocal -> output-column expansion (zeros on denom/pad cols).
    rep = (eyeH[:, :, None] * jnp.ones((1, 1, D), f32)).reshape(H, HD)
    rep_mat = jnp.concatenate([rep, jnp.zeros((H, NW - HD), f32)], axis=1)

    # bf16 MXU operands by default; softmax elementwise math stays f32 in-kernel.
    dsth_c = dsth.astype(compute_dtype)
    wdst_c = wdst_all.astype(compute_dtype)
    adst_c = adst_exp.astype(compute_dtype)
    zaug_c = z_aug.astype(compute_dtype)

    # ---- dst-row tiling -------------------------------------------------------
    if block_dst is None:
        # Prefer >=2 grid steps (v7x has two TensorCores) with large,
        # sublane-aligned tiles; small graphs fall back to a single step.
        block_dst = Nd
        for cand in (512, 256, 128, 64, 32, 16, 8):
            if cand < Nd and Nd % cand == 0:
                block_dst = cand
                break
    assert Nd % block_dst == 0, "block_dst must divide N_dst"
    assert block_dst == Nd or block_dst % 8 == 0, \
        "block_dst must be a multiple of 8 (f32/bf16 sublane tiling)"
    grid = (Nd // block_dst,)

    out_padded = pl.pallas_call(
        _gat_fused_kernel,
        out_shape=jax.ShapeDtypeStruct((Nd, NW), jnp.float32),
        grid_spec=pltpu.PrefetchScalarGridSpec(
            num_scalar_prefetch=0,
            grid=grid,
            in_specs=[
                pl.BlockSpec((block_dst, Fd), lambda i: (i, 0)),   # dst feature tile
                pl.BlockSpec((Fd, HD), lambda i: (0, 0)),          # fused W_dst
                pl.BlockSpec((HD, HNs), lambda i: (0, 0)),         # dst attn expansion
                pl.BlockSpec((1, HNs), lambda i: (0, 0)),          # src attn logits
                pl.BlockSpec((HNs, NW), lambda i: (0, 0)),         # block-diag z_src + denom cols
                pl.BlockSpec((H, NW), lambda i: (0, 0)),           # reciprocal expansion
            ],
            out_specs=pl.BlockSpec((block_dst, NW), lambda i: (i, 0)),
        ),
        compiler_params=pltpu.CompilerParams(
            # dst-row tiles are independent (softmax is per dst row): lets
            # v7x's two TensorCores split the grid; no-op at grid=(1,).
            dimension_semantics=("parallel",)),
    )(dsth_c, wdst_c, adst_c, es_flat, zaug_c, rep_mat)

    return out_padded[:, :HD]                       # slice off lane padding


def multihead_gat_reference(srch, dsth, w_src, w_dst, attn_w):
    """Pure-JAX reference mirroring the PyTorch/DGL semantics head by head."""
    H, _, D = w_src.shape
    outs = []
    for h in range(H):
        zs = srch @ w_src[h]                                    # src_fc
        zd = dsth @ w_dst[h]                                    # dst_fc
        a_src = attn_w[h, :D]
        a_dst = attn_w[h, D:]
        e = (zd @ a_dst)[:, None] + (zs @ a_src)[None, :]       # attn_fc(cat(z_src, z_dst))
        e = jnp.where(e > 0, e, LEAKY_SLOPE * e)                # LeakyReLU
        alpha = jax.nn.softmax(e, axis=-1)                      # softmax over in-edges
        outs.append(alpha @ zs)                                 # attended aggregation
    return jnp.concatenate(outs, axis=-1)                       # merge_type='cat'


if __name__ == "__main__":
    # Module hyper-params (srctype != dsttype branch -> separate src_fc / dst_fc).
    num_heads = 4
    src_dim = 32
    dst_dim = 32
    out_dim = 32                      # total; per-head D = out_dim // num_heads = 8
    D = out_dim // num_heads

    N_src, N_dst = 16, 16             # fully-connected bipartite graph

    key = jax.random.PRNGKey(0)
    k1, k2, k3, k4, k5 = jax.random.split(key, 5)

    # Node features.
    srch = jax.random.normal(k1, (N_src, src_dim), dtype=jnp.float32)
    dsth = jax.random.normal(k2, (N_dst, dst_dim), dtype=jnp.float32)

    # Deterministic parameter init (shapes from __init__; no checkpoint load).
    # nn.Linear(src_dim, D, bias=False).weight is (D, src_dim) -> stored transposed.
    w_src = 0.1 * jax.random.normal(k3, (num_heads, src_dim, D), dtype=jnp.float32)
    w_dst = 0.1 * jax.random.normal(k4, (num_heads, dst_dim, D), dtype=jnp.float32)
    # attn_fc = Linear(2*D, 1, bias=False).weight is (1, 2D) per head.
    attn_w = 0.1 * jax.random.normal(k5, (num_heads, 2 * D), dtype=jnp.float32)

    ref = multihead_gat_reference(srch, dsth, w_src, w_dst, attn_w)

    # f32 MXU path: tight check against the pure-JAX reference.
    out_f32 = jax.block_until_ready(
        multihead_gat(srch, dsth, w_src, w_dst, attn_w, compute_dtype=jnp.float32))
    assert out_f32.shape == (N_dst, out_dim)
    assert jnp.allclose(out_f32, ref, atol=1e-4, rtol=1e-4), "f32 mismatch vs reference"

    # bf16 MXU path (default, performance configuration): looser tolerance.
    out = jax.block_until_ready(multihead_gat(srch, dsth, w_src, w_dst, attn_w))
    out = out.astype(jnp.float32)
    assert out.shape == (N_dst, out_dim)
    assert jnp.allclose(out, ref, atol=5e-2, rtol=5e-2), "bf16 mismatch vs reference"

    print("KERNEL_OK")
</pallas_src>

<mosaic_0001>
module attributes {stable_mosaic.version = 11 : i64} {
  func.func @_gat_fused_kernel(%arg0: i32, %arg1: memref<8x32xf32, #tpu.memory_space<vmem>>, %arg2: memref<32x32xf32, #tpu.memory_space<vmem>>, %arg3: memref<32x64xf32, #tpu.memory_space<vmem>>, %arg4: memref<1x64xf32, #tpu.memory_space<vmem>>, %arg5: memref<64x128xf32, #tpu.memory_space<vmem>>, %arg6: memref<4x128xf32, #tpu.memory_space<vmem>>, %arg7: memref<8x128xf32, #tpu.memory_space<vmem>>) attributes {dimension_semantics = [#tpu.dimension_semantics<parallel>], iteration_bounds = array<i64: 2>, scalar_prefetch = 0 : i64, scratch_operands = 0 : i64, tpu.core_type = #tpu.core_type<tc>, window_params = [{transform_indices = @transform_0, window_bounds = array<i64: 8, 32>}, {pipeline_mode = #tpu.pipeline_mode<synchronous>, transform_indices = @transform_1, window_bounds = array<i64: 32, 32>}, {pipeline_mode = #tpu.pipeline_mode<synchronous>, transform_indices = @transform_2, window_bounds = array<i64: 32, 64>}, {pipeline_mode = #tpu.pipeline_mode<synchronous>, transform_indices = @transform_3, window_bounds = array<i64: 1, 64>}, {pipeline_mode = #tpu.pipeline_mode<synchronous>, transform_indices = @transform_4, window_bounds = array<i64: 64, 128>}, {pipeline_mode = #tpu.pipeline_mode<synchronous>, transform_indices = @transform_5, window_bounds = array<i64: 4, 128>}, {transform_indices = @transform_6, window_bounds = array<i64: 8, 128>}]} {
    %c0 = arith.constant 0 : index
    %c0_0 = arith.constant 0 : index
    %0 = vector.load %arg1[%c0, %c0_0] : memref<8x32xf32, #tpu.memory_space<vmem>>, vector<8x32xf32>
    %c0_1 = arith.constant 0 : index
    %c0_2 = arith.constant 0 : index
    %1 = vector.load %arg2[%c0_1, %c0_2] : memref<32x32xf32, #tpu.memory_space<vmem>>, vector<32x32xf32>
    %cst = arith.constant dense<0.000000e+00> : vector<8x32xf32>
    %2 = tpu.matmul %0, %1, %cst {dimension_numbers = #tpu.dot_dimension_numbers<[1], [0], [0], [1], [0, 0, 1, 1], [], []>} : vector<8x32xf32>, vector<32x32xf32>, vector<8x32xf32> -> vector<8x32xf32>
    %c0_3 = arith.constant 0 : index
    %c0_4 = arith.constant 0 : index
    %3 = vector.load %arg3[%c0_3, %c0_4] : memref<32x64xf32, #tpu.memory_space<vmem>>, vector<32x64xf32>
    %cst_5 = arith.constant dense<0.000000e+00> : vector<8x64xf32>
    %4 = tpu.matmul %2, %3, %cst_5 {dimension_numbers = #tpu.dot_dimension_numbers<[1], [0], [0], [1], [0, 0, 1, 1], [], []>} : vector<8x32xf32>, vector<32x64xf32>, vector<8x64xf32> -> vector<8x64xf32>
    %c0_6 = arith.constant 0 : index
    %c0_7 = arith.constant 0 : index
    %5 = vector.load %arg4[%c0_6, %c0_7] : memref<1x64xf32, #tpu.memory_space<vmem>>, vector<1x64xf32>
    %6 = vector.broadcast %5 : vector<1x64xf32> to vector<8x64xf32>
    %7 = arith.addf %4, %6 : vector<8x64xf32>
    %cst_8 = arith.constant 0.000000e+00 : f32
    %8 = vector.broadcast %cst_8 : f32 to vector<8x64xf32>
    %9 = arith.cmpf ogt, %7, %8 : vector<8x64xf32>
    %cst_9 = arith.constant 0.00999999977 : f32
    %10 = vector.broadcast %cst_9 : f32 to vector<8x64xf32>
    %11 = arith.mulf %10, %7 : vector<8x64xf32>
    %12 = arith.select %9, %7, %11 : vector<8x64xi1>, vector<8x64xf32>
    %cst_10 = arith.constant dense<0xFF800000> : vector<8xf32>
    %13 = vector.multi_reduction <maximumf>, %12, %cst_10 [1] : vector<8x64xf32> to vector<8xf32>
    %14 = vector.shape_cast %13 : vector<8xf32> to vector<8x1xf32>
    %15 = vector.broadcast %14 : vector<8x1xf32> to vector<8x64xf32>
    %16 = arith.subf %12, %15 : vector<8x64xf32>
    %17 = math.exp %16 : vector<8x64xf32>
    %c0_11 = arith.constant 0 : index
    %c0_12 = arith.constant 0 : index
    %18 = vector.load %arg5[%c0_11, %c0_12] : memref<64x128xf32, #tpu.memory_space<vmem>>, vector<64x128xf32>
    %cst_13 = arith.constant dense<0.000000e+00> : vector<8x128xf32>
    %19 = tpu.matmul %17, %18, %cst_13 {dimension_numbers = #tpu.dot_dimension_numbers<[1], [0], [0], [1], [0, 0, 1, 1], [], []>} : vector<8x64xf32>, vector<64x128xf32>, vector<8x128xf32> -> vector<8x128xf32>
    %20 = vector.extract_strided_slice %19 {offsets = [0, 32], sizes = [8, 4], strides = [1, 1]} : vector<8x128xf32> to vector<8x4xf32>
    %21 = tpu.reciprocal %20 {approx = true} : vector<8x4xf32> -> vector<8x4xf32>
    %22 = arith.mulf %20, %21 : vector<8x4xf32>
    %cst_14 = arith.constant 2.000000e+00 : f32
    %23 = vector.broadcast %cst_14 : f32 to vector<8x4xf32>
    %24 = arith.subf %23, %22 : vector<8x4xf32>
    %25 = arith.mulf %21, %24 : vector<8x4xf32>
    %c0_15 = arith.constant 0 : index
    %c0_16 = arith.constant 0 : index
    %26 = vector.load %arg6[%c0_15, %c0_16] : memref<4x128xf32, #tpu.memory_space<vmem>>, vector<4x128xf32>
    %cst_17 = arith.constant dense<0.000000e+00> : vector<8x128xf32>
    %27 = tpu.matmul %25, %26, %cst_17 {dimension_numbers = #tpu.dot_dimension_numbers<[1], [0], [0], [1], [0, 0, 1, 1], [], []>} : vector<8x4xf32>, vector<4x128xf32>, vector<8x128xf32> -> vector<8x128xf32>
    %28 = arith.mulf %19, %27 : vector<8x128xf32>
    %c0_18 = arith.constant 0 : index
    %c0_19 = arith.constant 0 : index
    %29 = vector.load %arg7[%c0_18, %c0_19] : memref<8x128xf32, #tpu.memory_space<vmem>>, vector<8x128xf32>
    tpu.vector_store %arg7[%c0_18, %c0_19], %28 {strides = array<i32>} : memref<8x128xf32, #tpu.memory_space<vmem>>, vector<8x128xf32>,
    return
  }
  func.func @transform_0(%arg0: i32) -> (i32, i32) {
    %c0_i32 = arith.constant 0 : i32
    %c0_i32_0 = arith.constant 0 : i32
    return %arg0, %c0_i32 : i32, i32
  }
  func.func @transform_1(%arg0: i32) -> (i32, i32) {
    %c0_i32 = arith.constant 0 : i32
    %c0_i32_0 = arith.constant 0 : i32
    %c0_i32_1 = arith.constant 0 : i32
    return %c0_i32, %c0_i32_0 : i32, i32
  }
  func.func @transform_2(%arg0: i32) -> (i32, i32) {
    %c0_i32 = arith.constant 0 : i32
    %c0_i32_0 = arith.constant 0 : i32
    %c0_i32_1 = arith.constant 0 : i32
    return %c0_i32, %c0_i32_0 : i32, i32
  }
  func.func @transform_3(%arg0: i32) -> (i32, i32) {
    %c0_i32 = arith.constant 0 : i32
    %c0_i32_0 = arith.constant 0 : i32
    %c0_i32_1 = arith.constant 0 : i32
    return %c0_i32, %c0_i32_0 : i32, i32
  }
  func.func @transform_4(%arg0: i32) -> (i32, i32) {
    %c0_i32 = arith.constant 0 : i32
    %c0_i32_0 = arith.constant 0 : i32
    %c0_i32_1 = arith.constant 0 : i32
    return %c0_i32, %c0_i32_0 : i32, i32
  }
  func.func @transform_5(%arg0: i32) -> (i32, i32) {
    %c0_i32 = arith.constant 0 : i32
    %c0_i32_0 = arith.constant 0 : i32
    %c0_i32_1 = arith.constant 0 : i32
    return %c0_i32, %c0_i32_0 : i32, i32
  }
  func.func @transform_6(%arg0: i32) -> (i32, i32) {
    %c0_i32 = arith.constant 0 : i32
    %c0_i32_0 = arith.constant 0 : i32
    return %arg0, %c0_i32 : i32, i32
  }
}

</mosaic_0001>

<llo_original>
// kernel: tpu_custom_call.1
$region0: #{tpu_custom_call.1}
  #allocation0 [shape = 'u32[]', space=smem, size = 0x4, offset = 0x4, fixed_abs, tag = 'smem constant byte address 0x4 - core index']
  #allocation1 [shape = 'u32[72,128]{1,0:T(1,128)}', space=vmem, size = 0x9000, scoped, tag = 'internal scratch']
  %s0 = inlined_call_operand.hbm [shape: f32[16,32], index: 0, kind: input, shape index: {}]
  %s1 = inlined_call_operand.hbm [shape: f32[32,32], index: 1, kind: input, shape index: {}]
  %s2 = inlined_call_operand.hbm [shape: f32[32,64], index: 2, kind: input, shape index: {}]
  %s3 = inlined_call_operand.hbm [shape: f32[1,64], index: 3, kind: input, shape index: {}]
  %s4 = inlined_call_operand.hbm [shape: f32[64,128], index: 4, kind: input, shape index: {}]
  %s5 = inlined_call_operand.vmem [shape: f32[4,128], index: 5, kind: input, shape index: {}]
  %s6 = inlined_call_operand.hbm [shape: f32[16,128], index: 6, kind: output, shape index: {}]
  %s7 = sld [smem:[#allocation0]]
  $region77: #{tpu_custom_call.1} parent=0
    _
  %s9 = ssub.s32 1, %s7
  %s10 = scalar_select 0, %s9, %s7
  $region1: #{tpu_custom_call.1} parent=0
    #allocation2 [shape = 'u8[8192]{0}', space=vmem, size = 0x2000, scoped, tag = 'input window, operand 0']
    #allocation3 [shape = 's32[2]{0}', space=sflag, size = 0x8, scoped, tag = 'scoped memory for tpu_custom_call.1']
    #allocation4 [shape = 's32[2]{0}', space=sflag, size = 0x8, scoped, tag = 'scoped memory for tpu_custom_call.1']
    #allocation5 [shape = 'u8[16384]{0}', space=vmem, size = 0x4000, scoped, tag = 'input window, operand 1, single buffered']
    #allocation6 [shape = 's32[1]{0}', space=sflag, size = 0x4, scoped, tag = 'scoped memory for tpu_custom_call.1']
    #allocation7 [shape = 'u8[16384]{0}', space=vmem, size = 0x4000, scoped, tag = 'input window, operand 2, single buffered']
    #allocation8 [shape = 'u8[512]{0}', space=vmem, size = 0x400, scoped, tag = 'input window, operand 3, single buffered']
    #allocation9 [shape = 's32[1]{0}', space=sflag, size = 0x4, scoped, tag = 'scoped memory for tpu_custom_call.1']
    #allocation10 [shape = 'u8[32768]{0}', space=vmem, size = 0x8000, scoped, tag = 'input window, operand 4, single buffered']
    #allocation11 [shape = 'u8[8192]{0}', space=vmem, size = 0x2000, scoped, tag = 'output window, operand 0']
    %11 = vsyncpa [#allocation3], 0
    %s12 = scalar_lea.sflag [#allocation3], 1
    %13 = vsyncpa %s12, 0
    %14 = vsyncpa [#allocation6], 0
    %15 = vsyncpa [#allocation9], 0
    %16 = vsyncpa [#allocation4], 0
    %s17 = scalar_lea.sflag [#allocation4], 1
    %18 = vsyncpa %s17, 0
    loop: start=0, step=1, limit=4
    $region2: #{tpu_custom_call.1} parent=1 // loop_pre_header
      _
    $region3: #{tpu_custom_call.1} parent=1 // loop_header
      %s20 = sphi 0, %s24
      %p21 = scmp.ge.s32.totalorder %s20, 4
      %s30 = sphi 0, %s32
      %s33 = sphi 0, %s30
      %s34 = sphi 0, %s33
      %s50 = sphi 0, %s34
      %s54 = sphi 0, %s54
      %s56 = sphi 0, %s54
      %s57 = sphi 0, %s56
      %s71 = sphi 0, %s57
      %s75 = sphi 0, %s75
      %s77 = sphi 0, %s75
      %s78 = sphi 0, %s77
      %s92 = sphi 0, %s78
      %s96 = sphi 0, %s96
      %s98 = sphi 0, %s96
      %s99 = sphi 0, %s98
      %s113 = sphi 0, %s99
      %s117 = sphi 0, %s117
      %s119 = sphi 0, %s117
      %s120 = sphi 0, %s119
      %s134 = sphi 0, %s120
      %s138 = sphi 0, %s138
      %s140 = sphi 0, %s138
      %s141 = sphi 0, %s140
      %s155 = sphi 0, %s141
      %s161 = sphi 0, %s163
      %s164 = sphi 0, %s161
      %s165 = sphi 0, %s164
      %s181 = sphi 0, %s165
    $region4: #{tpu_custom_call.1} parent=1 // loop_header_branch
      %23 = sbr.rel (%p21) target = $region8
    $region5: #{tpu_custom_call.1} parent=1 // loop_body
      %s25 = ssub.s32 %s20, 1
      %s26 = ssub.s32 %s20, 2
      %s27 = sadd.s32 %s20, 1
      %s28 = ssub.s32 %s20, %s27
      %p29 = scmp.eq.s32.totalorder %s28, 0
      %s31 = sadd.s32 %s30, 1
      %s32 = scalar_select %p29, %s30, %s31
      %p35 = pneg %p29
      %p36 = scmp.eq.s32.totalorder %s20, 1
      %p37 = por %p35, %p36
      %p38 = scmp.ne.s32.totalorder %s30, %s33
      %p39 = scmp.eq.s32.totalorder %s20, 0
      %p40 = por %p38, %p39
      %p41 = scmp.ne.s32.totalorder %s30, %s33
      %p42 = scmp.eq.s32.totalorder %s25, 1
      %p43 = por %p41, %p42
      %p44 = scmp.ne.s32.totalorder %s33, %s34
      %p45 = scmp.eq.s32.totalorder %s25, 0
      %p46 = por %p44, %p45
      %p47 = scmp.ne.s32.totalorder %s33, %s34
      %p48 = scmp.eq.s32.totalorder %s26, 1
      %p49 = por %p47, %p48
      %p51 = scmp.ne.s32.totalorder %s34, %s50
      %p52 = scmp.eq.s32.totalorder %s26, 0
      %p53 = por %p51, %p52
      %s55 = sadd.s32 %s54, 1
      %p58 = scmp.eq.s32.totalorder %s20, 1
      %p59 = scmp.ne.s32.totalorder %s54, %s56
      %p60 = scmp.eq.s32.totalorder %s20, 0
      %p61 = por %p59, %p60
      %p62 = scmp.ne.s32.totalorder %s54, %s56
      %p63 = scmp.eq.s32.totalorder %s25, 1
      %p64 = por %p62, %p63
      %p65 = scmp.ne.s32.totalorder %s56, %s57
      %p66 = scmp.eq.s32.totalorder %s25, 0
      %p67 = por %p65, %p66
      %p68 = scmp.ne.s32.totalorder %s56, %s57
      %p69 = scmp.eq.s32.totalorder %s26, 1
      %p70 = por %p68, %p69
      %p72 = scmp.ne.s32.totalorder %s57, %s71
      %p73 = scmp.eq.s32.totalorder %s26, 0
      %p74 = por %p72, %p73
      %s76 = sadd.s32 %s75, 1
      %p79 = scmp.eq.s32.totalorder %s20, 1
      %p80 = scmp.ne.s32.totalorder %s75, %s77
      %p81 = scmp.eq.s32.totalorder %s20, 0
      %p82 = por %p80, %p81
      %p83 = scmp.ne.s32.totalorder %s75, %s77
      %p84 = scmp.eq.s32.totalorder %s25, 1
      %p85 = por %p83, %p84
      %p86 = scmp.ne.s32.totalorder %s77, %s78
      %p87 = scmp.eq.s32.totalorder %s25, 0
      %p88 = por %p86, %p87
      %p89 = scmp.ne.s32.totalorder %s77, %s78
      %p90 = scmp.eq.s32.totalorder %s26, 1
      %p91 = por %p89, %p90
      %p93 = scmp.ne.s32.totalorder %s78, %s92
      %p94 = scmp.eq.s32.totalorder %s26, 0
      %p95 = por %p93, %p94
      %s97 = sadd.s32 %s96, 1
      %p100 = scmp.eq.s32.totalorder %s20, 1
      %p101 = scmp.ne.s32.totalorder %s96, %s98
      %p102 = scmp.eq.s32.totalorder %s20, 0
      %p103 = por %p101, %p102
      %p104 = scmp.ne.s32.totalorder %s96, %s98
      %p105 = scmp.eq.s32.totalorder %s25, 1
      %p106 = por %p104, %p105
      %p107 = scmp.ne.s32.totalorder %s98, %s99
      %p108 = scmp.eq.s32.totalorder %s25, 0
      %p109 = por %p107, %p108
      %p110 = scmp.ne.s32.totalorder %s98, %s99
      %p111 = scmp.eq.s32.totalorder %s26, 1
      %p112 = por %p110, %p111
      %p114 = scmp.ne.s32.totalorder %s99, %s113
      %p115 = scmp.eq.s32.totalorder %s26, 0
      %p116 = por %p114, %p115
      %s118 = sadd.s32 %s117, 1
      %p121 = scmp.eq.s32.totalorder %s20, 1
      %p122 = scmp.ne.s32.totalorder %s117, %s119
      %p123 = scmp.eq.s32.totalorder %s20, 0
      %p124 = por %p122, %p123
      %p125 = scmp.ne.s32.totalorder %s117, %s119
      %p126 = scmp.eq.s32.totalorder %s25, 1
      %p127 = por %p125, %p126
      %p128 = scmp.ne.s32.totalorder %s119, %s120
      %p129 = scmp.eq.s32.totalorder %s25, 0
      %p130 = por %p128, %p129
      %p131 = scmp.ne.s32.totalorder %s119, %s120
      %p132 = scmp.eq.s32.totalorder %s26, 1
      %p133 = por %p131, %p132
      %p135 = scmp.ne.s32.totalorder %s120, %s134
      %p136 = scmp.eq.s32.totalorder %s26, 0
      %p137 = por %p135, %p136
      %s139 = sadd.s32 %s138, 1
      %p142 = scmp.eq.s32.totalorder %s20, 1
      %p143 = scmp.ne.s32.totalorder %s138, %s140
      %p144 = scmp.eq.s32.totalorder %s20, 0
      %p145 = por %p143, %p144
      %p146 = scmp.ne.s32.totalorder %s138, %s140
      %p147 = scmp.eq.s32.totalorder %s25, 1
      %p148 = por %p146, %p147
      %p149 = scmp.ne.s32.totalorder %s140, %s141
      %p150 = scmp.eq.s32.totalorder %s25, 0
      %p151 = por %p149, %p150
      %p152 = scmp.ne.s32.totalorder %s140, %s141
      %p153 = scmp.eq.s32.totalorder %s26, 1
      %p154 = por %p152, %p153
      %p156 = scmp.ne.s32.totalorder %s141, %s155
      %p157 = scmp.eq.s32.totalorder %s26, 0
      %p158 = por %p156, %p157
      %s159 = ssub.s32 %s20, %s27
      %p160 = scmp.eq.s32.totalorder %s159, 0
      %s162 = sadd.s32 %s161, 1
      %s163 = scalar_select %p160, %s161, %s162
      %p166 = pneg %p160
      %p167 = scmp.eq.s32.totalorder %s20, 1
      %p168 = por %p166, %p167
      %p169 = scmp.ne.s32.totalorder %s161, %s164
      %p170 = scmp.eq.s32.totalorder %s20, 0
      %p171 = por %p169, %p170
      %p172 = scmp.ne.s32.totalorder %s161, %s164
      %p173 = scmp.eq.s32.totalorder %s25, 1
      %p174 = por %p172, %p173
      %p175 = scmp.ne.s32.totalorder %s164, %s165
      %p176 = scmp.eq.s32.totalorder %s25, 0
      %p177 = por %p175, %p176
      %p178 = scmp.ne.s32.totalorder %s164, %s165
      %p179 = scmp.eq.s32.totalorder %s26, 1
      %p180 = por %p178, %p179
      %p182 = scmp.ne.s32.totalorder %s165, %s181
      %p183 = scmp.eq.s32.totalorder %s26, 0
      %p184 = por %p182, %p183
      %p185 = scmp.le.s32.totalorder 1, %s20
      %p186 = scmp.lt.s32.totalorder %s20, 3
      %p187 = pnand %p185, %p186
      %p188 = pneg %p187
      // Predicated region
      $region9: #{tpu_custom_call.1} parent=5 // pred_check
        _
      $region10: #{tpu_custom_call.1} parent=5 // pred_check_branch
        %190 = sbr.rel (%p187) target = $region12
      $region11: #{tpu_custom_call.1} parent=5 // pred_region
        %s191 = ssub.s32 %s20, 1
        // Predicated region
        $region13: #{tpu_custom_call.1} parent=11 // pred_check
          %p192 = pneg %p67
        $region14: #{tpu_custom_call.1} parent=11 // pred_check_branch
          %194 = sbr.rel (%p192) target = $region16
        $region15: #{tpu_custom_call.1} parent=11 // pred_region
          %196 = vsyncadd [#allocation6], 0
          %s197 = sshll.u32 %s1, 4
          %s198 = int_to_ptr.hbm [resolvable:$true] %s197
          %s199 = sshll.u32 [#allocation5], 4
          %s200 = int_to_ptr.vmem [resolvable:$true] %s199
          %205 = dma.hbm_to_vmem [thread:$0]  %s198, 512, %s200, [#allocation6], 128, 128, 8
        $region16: #{tpu_custom_call.1} parent=11 // pred_fallthru
          _
        // Predicated region
        $region17: #{tpu_custom_call.1} parent=11 // pred_check
          %p206 = pneg %p88
        $region18: #{tpu_custom_call.1} parent=11 // pred_check_branch
          %208 = sbr.rel (%p206) target = $region20
        $region19: #{tpu_custom_call.1} parent=11 // pred_region
          %210 = vsyncadd [#allocation6], 0
          %s211 = sshll.u32 %s2, 4
          %s212 = int_to_ptr.hbm [resolvable:$true] %s211
          %s213 = sshll.u32 [#allocation7], 4
          %s214 = int_to_ptr.vmem [resolvable:$true] %s213
          %219 = dma.hbm_to_vmem [thread:$0]  %s212, 512, %s214, [#allocation6], 128, 128, 8
        $region20: #{tpu_custom_call.1} parent=11 // pred_fallthru
          _
        // Predicated region
        $region21: #{tpu_custom_call.1} parent=11 // pred_check
          %p220 = pneg %p109
        $region22: #{tpu_custom_call.1} parent=11 // pred_check_branch
          %222 = sbr.rel (%p220) target = $region24
        $region23: #{tpu_custom_call.1} parent=11 // pred_region
          %224 = vsyncadd [#allocation9], 0
          %s226 = sshll.u32 %s3, 4
          %s227 = int_to_ptr.hbm [resolvable:$true] %s226
          %s228 = sshll.u32 [#allocation8], 4
          %s229 = int_to_ptr.vmem [resolvable:$true] %s228
          %231 = dma.hbm_to_vmem [thread:$0]  %s227, 16, %s229, [#allocation9]
        $region24: #{tpu_custom_call.1} parent=11 // pred_fallthru
          _
        // Predicated region
        $region25: #{tpu_custom_call.1} parent=11 // pred_check
          %p232 = pneg %p130
        $region26: #{tpu_custom_call.1} parent=11 // pred_check_branch
          %234 = sbr.rel (%p232) target = $region28
        $region27: #{tpu_custom_call.1} parent=11 // pred_region
          %236 = vsyncadd [#allocation9], 0
          %s237 = sshll.u32 %s4, 4
          %s238 = int_to_ptr.hbm [resolvable:$true] %s237
          %s239 = sshll.u32 [#allocation10], 4
          %s240 = int_to_ptr.vmem [resolvable:$true] %s239
          %245 = dma.hbm_to_vmem [thread:$0]  %s238, 1024, %s240, [#allocation9], 128, 128, 8
        $region28: #{tpu_custom_call.1} parent=11 // pred_fallthru
          _
        // Predicated region
        $region29: #{tpu_custom_call.1} parent=11 // pred_check
          %p246 = pneg %p151
        $region30: #{tpu_custom_call.1} parent=11 // pred_check_branch
          %248 = sbr.rel (%p246) target = $region32
        $region31: #{tpu_custom_call.1} parent=11 // pred_region
          _
        $region32: #{tpu_custom_call.1} parent=11 // pred_fallthru
          _
      $region12: #{tpu_custom_call.1} parent=5 // pred_fallthru
        _
      %p249 = scmp.lt.s32.totalorder %s20, 2
      // Predicated region
      $region33: #{tpu_custom_call.1} parent=5 // pred_check
        %p250 = pneg %p249
      $region34: #{tpu_custom_call.1} parent=5 // pred_check_branch
        %252 = sbr.rel (%p250) target = $region36
      $region35: #{tpu_custom_call.1} parent=5 // pred_region
        // Predicated region
        $region37: #{tpu_custom_call.1} parent=35 // pred_check
          %p253 = pneg %p40
        $region38: #{tpu_custom_call.1} parent=35 // pred_check_branch
          %255 = sbr.rel (%p253) target = $region40
        $region39: #{tpu_custom_call.1} parent=35 // pred_region
          %s256 = sand.u32 %s30, 1
          %s257 = scalar_lea.sflag [#allocation3], %s256
          %s258 = sand.u32 %s30, 1
          %s259 = smul.addr %s258, 8
          %s260 = scalar_lea.vmem [#allocation2], %s259
          %262 = vsyncadd %s257, 0
          %s263 = smul.addr %s20, 8
          %s264 = scalar_lea.hbm %s0, %s263
          %s266 = sshll.u32 %s264, 4
          %s267 = int_to_ptr.hbm [resolvable:$true] %s266
          %s268 = sshll.u32 %s260, 4
          %s269 = int_to_ptr.vmem [resolvable:$true] %s268
          %271 = dma.hbm_to_vmem [thread:$0]  %s267, 128, %s269, %s257
        $region40: #{tpu_custom_call.1} parent=35 // pred_fallthru
          _
      $region36: #{tpu_custom_call.1} parent=5 // pred_fallthru
        _
      %p272 = scmp.le.s32.totalorder 1, %s20
      %p273 = scmp.lt.s32.totalorder %s20, 3
      %p274 = pnand %p272, %p273
      %p275 = pneg %p274
      // Predicated region
      $region41: #{tpu_custom_call.1} parent=5 // pred_check
        _
      $region42: #{tpu_custom_call.1} parent=5 // pred_check_branch
        %277 = sbr.rel (%p274) target = $region44
      $region43: #{tpu_custom_call.1} parent=5 // pred_region
        %s278 = ssub.s32 %s20, 1
        %s279 = sand.u32 %s33, 1
        %s280 = scalar_lea.sflag [#allocation3], %s279
        %s281 = sand.u32 %s33, 1
        %s282 = smul.addr %s281, 8
        %s283 = scalar_lea.vmem [#allocation2], %s282
        // Predicated region
        $region45: #{tpu_custom_call.1} parent=43 // pred_check
          %p284 = pneg %p46
        $region46: #{tpu_custom_call.1} parent=43 // pred_check_branch
          %286 = sbr.rel (%p284) target = $region48
        $region47: #{tpu_custom_call.1} parent=43 // pred_region
          %288 = dma.done %s280, 128
        $region48: #{tpu_custom_call.1} parent=43 // pred_fallthru
          _
        // Predicated region
        $region49: #{tpu_custom_call.1} parent=43 // pred_check
          %p289 = pneg %p67
        $region50: #{tpu_custom_call.1} parent=43 // pred_check_branch
          %291 = sbr.rel (%p289) target = $region52
        $region51: #{tpu_custom_call.1} parent=43 // pred_region
          %293 = dma.done [#allocation6], 512
        $region52: #{tpu_custom_call.1} parent=43 // pred_fallthru
          _
        // Predicated region
        $region53: #{tpu_custom_call.1} parent=43 // pred_check
          %p294 = pneg %p88
        $region54: #{tpu_custom_call.1} parent=43 // pred_check_branch
          %296 = sbr.rel (%p294) target = $region56
        $region55: #{tpu_custom_call.1} parent=43 // pred_region
          %298 = dma.done [#allocation6], 512
        $region56: #{tpu_custom_call.1} parent=43 // pred_fallthru
          _
        // Predicated region
        $region57: #{tpu_custom_call.1} parent=43 // pred_check
          %p299 = pneg %p109
        $region58: #{tpu_custom_call.1} parent=43 // pred_check_branch
          %301 = sbr.rel (%p299) target = $region60
        $region59: #{tpu_custom_call.1} parent=43 // pred_region
          %303 = dma.done [#allocation9], 16
        $region60: #{tpu_custom_call.1} parent=43 // pred_fallthru
          _
        // Predicated region
        $region61: #{tpu_custom_call.1} parent=43 // pred_check
          %p304 = pneg %p130
        $region62: #{tpu_custom_call.1} parent=43 // pred_check_branch
          %306 = sbr.rel (%p304) target = $region64
        $region63: #{tpu_custom_call.1} parent=43 // pred_region
          %308 = dma.done [#allocation9], 1024
        $region64: #{tpu_custom_call.1} parent=43 // pred_fallthru
          _
        %s309 = sand.u32 %s33, 1
        %s310 = scalar_lea.sflag [#allocation3], %s309
        %s311 = sand.u32 %s33, 1
        %s312 = smul.addr %s311, 8
        %s313 = scalar_lea.vmem [#allocation2], %s312
        %p314 = pneg %p46
        %p315 = pneg %p43
        %p316 = pneg %p67
        %p317 = pneg %p64
        %p318 = pneg %p88
        %p319 = pneg %p85
        %p320 = pneg %p109
        %p321 = pneg %p106
        %p322 = pneg %p130
        %p323 = pneg %p127
        %p324 = pneg %p151
        %p325 = pneg %p148
        %p326 = pneg %p177
        %p327 = pneg %p174
        %s328 = sand.u32 %s164, 1
        %s329 = scalar_lea.sflag [#allocation4], %s328
        %s330 = sand.u32 %s164, 1
        %s331 = smul.addr %s330, 8
        %s332 = scalar_lea.vmem [#allocation11], %s331
        %v333 = vld [vmem:[%s283] sm:$0xff]
        %v334 = vld [vmem:[#allocation5] sm:$0xff]
        %v335 = vld [vmem:[#allocation5 + $0x8] sm:$0xff]
        %v336 = vld [vmem:[#allocation5 + $0x10] sm:$0xff]
        %v337 = vld [vmem:[#allocation5 + $0x18] sm:$0xff]
        %vm338 = vcmask 261120
        %v340 = vsel %vm338, %v333, 0
        %342 = vmatpush.msra.mxu0 0.0
        %343 = vmatpush.msra.mxu0 0.0
        %344 = vmatpush.msra.mxu0 0.0
        %345 = vmatpush.msra.mxu0 0.0
        %346 = vmatpush.msra.mxu0 0.0
        %347 = vmatpush.msra.mxu0 0.0
        %348 = vmatpush.msra.mxu0 0.0
        %349 = vmatpush.msra.mxu0 0.0
        %350 = vmatpush.msra.mxu0 0.0
        %351 = vmatpush.msra.mxu0 0.0
        %352 = vmatpush.msra.mxu0 0.0
        %353 = vmatpush.msra.mxu0 0.0
        %354 = vmatpush.msra.mxu0 %v337
        %355 = vmatpush.msra.mxu0 %v336
        %356 = vmatpush.msra.mxu0 %v335
        %357 = vmatpush.msra.mxu0 %v334
        %358 = vmatmul.f32.gmra.mxu0 %v340
        %v359 = vpop.f32.mrf.mxu0
        %v360 = vadd.f32 0.0, %v359
        %361 = vdwg.mxu0
        %v362 = vld [vmem:[#allocation7] sm:$0xff]
        %v363 = vld [vmem:[#allocation7 + $0x8] sm:$0xff]
        %v364 = vld [vmem:[#allocation7 + $0x10] sm:$0xff]
        %v365 = vld [vmem:[#allocation7 + $0x18] sm:$0xff]
        %v366 = vld [vmem:[#allocation8] sm:$0x1]
        %v368 = vperm.slane %v366, 0
        %v371 = vsel %vm338, %v360, 0
        %373 = vmatpush.msra.mxu0 0.0
        %374 = vmatpush.msra.mxu0 0.0
        %375 = vmatpush.msra.mxu0 0.0
        %376 = vmatpush.msra.mxu0 0.0
        %377 = vmatpush.msra.mxu0 0.0
        %378 = vmatpush.msra.mxu0 0.0
        %379 = vmatpush.msra.mxu0 0.0
        %380 = vmatpush.msra.mxu0 0.0
        %381 = vmatpush.msra.mxu0 0.0
        %382 = vmatpush.msra.mxu0 0.0
        %383 = vmatpush.msra.mxu0 0.0
        %384 = vmatpush.msra.mxu0 0.0
        %385 = vmatpush.msra.mxu0 %v365
        %386 = vmatpush.msra.mxu0 %v364
        %387 = vmatpush.msra.mxu0 %v363
        %388 = vmatpush.msra.mxu0 %v362
        %389 = vmatmul.f32.gmra.mxu0 %v371
        %v390 = vpop.f32.mrf.mxu0
        %v391 = vadd.f32 %v368, %v390
        %392 = vdwg.mxu0
        %vm393 = vcmp.gt.f32.partialorder %v391, 0.0
        %v394 = vmul.f32 %v391, 0.01
        %v395 = vsel %vm393, %v391, %v394
        %vm396 = vcmask 523264
        %v397 = vsel %vm396, %v395, -inf
        %398 = vmax.xlane.f32.xlu0 %v397
        %v399 = vpop.xlane.xlu0 %398
        %v400 = vsub.f32 %v395, %v399
        %v401 = vmul.f32 %v400, 1.442695
        %v402 = vpow.pop %v401
        %v403 = vld [vmem:[#allocation10] sm:$0xff]
        %v404 = vld [vmem:[#allocation10 + $0x8] sm:$0xff]
        %v405 = vld [vmem:[#allocation10 + $0x10] sm:$0xff]
        %v406 = vld [vmem:[#allocation10 + $0x18] sm:$0xff]
        %v407 = vld [vmem:[#allocation10 + $0x20] sm:$0xff]
        %v408 = vld [vmem:[#allocation10 + $0x28] sm:$0xff]
        %v409 = vld [vmem:[#allocation10 + $0x30] sm:$0xff]
        %v410 = vld [vmem:[#allocation10 + $0x38] sm:$0xff]
        %v412 = vsel %vm396, %v402, 0
        %414 = vmatpush.msra.mxu0 0.0
        %415 = vmatpush.msra.mxu0 0.0
        %416 = vmatpush.msra.mxu0 0.0
        %417 = vmatpush.msra.mxu0 0.0
        %418 = vmatpush.msra.mxu0 0.0
        %419 = vmatpush.msra.mxu0 0.0
        %420 = vmatpush.msra.mxu0 0.0
        %421 = vmatpush.msra.mxu0 0.0
        %422 = vmatpush.msra.mxu0 %v410
        %423 = vmatpush.msra.mxu0 %v409
        %424 = vmatpush.msra.mxu0 %v408
        %425 = vmatpush.msra.mxu0 %v407
        %426 = vmatpush.msra.mxu0 %v406
        %427 = vmatpush.msra.mxu0 %v405
        %428 = vmatpush.msra.mxu0 %v404
        %429 = vmatpush.msra.mxu0 %v403
        %430 = vmatmul.f32.gmra.mxu0 %v412
        %v431 = vpop.f32.mrf.mxu0
        %v432 = vadd.f32 0.0, %v431
        %433 = vdwg.mxu0
        %v434 = vrcp.pop %v432
        %v435 = vmul.f32 %v432, %v434
        %v436 = vsub.f32 2.0, %v435
        %v437 = vmul.f32 %v434, %v436
        %v438 = vld [vmem:[%s5] sm:$0xf]
        %440 = vrot.lane.b32.xlu0 %v437, 96
        %v441 = vpop.permute.xlu0 %440
        %vm442 = vcmask 31744
        %v443 = vsel %vm442, %v441, 0
        %vm445 = vcmask 1043456
        %v447 = vsel %vm445, %v438, 0
        %449 = vmatpush.msra.mxu0 0.0
        %450 = vmatpush.msra.mxu0 0.0
        %451 = vmatpush.msra.mxu0 0.0
        %452 = vmatpush.msra.mxu0 0.0
        %453 = vmatpush.msra.mxu0 0.0
        %454 = vmatpush.msra.mxu0 0.0
        %455 = vmatpush.msra.mxu0 0.0
        %456 = vmatpush.msra.mxu0 0.0
        %457 = vmatpush.msra.mxu0 0.0
        %458 = vmatpush.msra.mxu0 0.0
        %459 = vmatpush.msra.mxu0 0.0
        %460 = vmatpush.msra.mxu0 0.0
        %461 = vmatpush.msra.mxu0 0.0
        %462 = vmatpush.msra.mxu0 0.0
        %463 = vmatpush.msra.mxu0 0.0
        %464 = vmatpush.msra.mxu0 %v447
        %465 = vmatmul.f32.gmra.mxu0 %v443
        %v466 = vpop.f32.mrf.mxu0
        %v467 = vadd.f32 0.0, %v466
        %468 = vdwg.mxu0
        %v469 = vmul.f32 %v432, %v467
        %470 = vst [vmem:[%s332] sm:$0xff] %v469
        %s471 = sand.u32 %s164, 1
        %s472 = scalar_lea.sflag [#allocation4], %s471
        %s473 = sand.u32 %s164, 1
        %s474 = smul.addr %s473, 8
        %s475 = scalar_lea.vmem [#allocation11], %s474
        // Predicated region
        $region65: #{tpu_custom_call.1} parent=43 // pred_check
          %p476 = pneg %p174
        $region66: #{tpu_custom_call.1} parent=43 // pred_check_branch
          %478 = sbr.rel (%p476) target = $region68
        $region67: #{tpu_custom_call.1} parent=43 // pred_region
          %480 = vsyncadd %s472, 0
          %s481 = smul.addr %s25, 8
          %s482 = scalar_lea.hbm %s6, %s481
          %s484 = sshll.u32 %s475, 4
          %s485 = int_to_ptr.vmem [resolvable:$true] %s484
          %s486 = sshll.u32 %s482, 4
          %s487 = int_to_ptr.hbm [resolvable:$true] %s486
          %489 = dma.vmem_to_hbm [thread:$0]  %s485, 128, %s487, %s472
        $region68: #{tpu_custom_call.1} parent=43 // pred_fallthru
          _
      $region44: #{tpu_custom_call.1} parent=5 // pred_fallthru
        _
      %p490 = scmp.le.s32.totalorder 2, %s20
      // Predicated region
      $region69: #{tpu_custom_call.1} parent=5 // pred_check
        %p491 = pneg %p490
      $region70: #{tpu_custom_call.1} parent=5 // pred_check_branch
        %493 = sbr.rel (%p491) target = $region72
      $region71: #{tpu_custom_call.1} parent=5 // pred_region
        %s494 = ssub.s32 %s20, 2
        // Predicated region
        $region73: #{tpu_custom_call.1} parent=71 // pred_check
          %p495 = pneg %p180
        $region74: #{tpu_custom_call.1} parent=71 // pred_check_branch
          %497 = sbr.rel (%p495) target = $region76
        $region75: #{tpu_custom_call.1} parent=71 // pred_region
          %s498 = sand.u32 %s165, 1
          %s499 = scalar_lea.sflag [#allocation4], %s498
          %s500 = sand.u32 %s165, 1
          %s501 = smul.addr %s500, 8
          %s502 = scalar_lea.vmem [#allocation11], %s501
          %504 = dma.done %s499, 128
        $region76: #{tpu_custom_call.1} parent=71 // pred_fallthru
          _
      $region72: #{tpu_custom_call.1} parent=5 // pred_fallthru
        _
    $region6: #{tpu_custom_call.1} parent=1 // loop_footer
      %s24 = sadd.s32 1, %s20
    $region7: #{tpu_custom_call.1} parent=1 // loop_footer_branch
      %19 = sbr.rel target = $region3
    $region8: #{tpu_custom_call.1} parent=1 // loop_exit
      _
    %505 = vsyncpa [#allocation3], 1
    %s506 = scalar_lea.sflag [#allocation3], 1
    %507 = vsyncpa %s506, 1
    %508 = vsyncpa [#allocation6], 1
    %509 = vsyncpa [#allocation9], 1
    %510 = vsyncpa [#allocation4], 1
    %s511 = scalar_lea.sflag [#allocation4], 1
    %512 = vsyncpa %s511, 1

</llo_original>
